<compile_context>
chip_gen: v6e
topology: v6e:2x2x1
jax: 0.10.0
libtpu: 0.0.40
codegen_flags: <defaults>
</compile_context>

<pallas_src>
import functools
import math

import jax
import jax.numpy as jnp
from jax.experimental import pallas as pl
from jax.experimental.pallas import tpu as pltpu

# Scoped-VMEM ceiling with headroom for v7x (64 MiB physical); also raises the
# 16/32 MiB defaults on v5e/v6e.
VMEM_LIMIT = 48 * 1024 * 1024


# ------------------------------ tiling helper ------------------------------ #

def _pick_tile(dim, target, align):
    """Largest divisor of `dim` that is a multiple of `align` and <= target.

    Falls back to the full dimension (always a legal block) only when no
    aligned divisor exists (e.g. dim < align).
    """
    t = min(target, dim)
    t = (t // align) * align
    while t >= align:
        if dim % t == 0:
            return t
        t -= align
    return dim  # TODO(synk): pad M in the wrapper for pathological non-aligned dims.


# ----------------------- tiled linear (bf16 MXU GEMM) ----------------------- #

def _matmul_kernel(x_ref, w_ref, b_ref, o_ref, acc_ref, *, activation):
    @pl.when(pl.program_id(2) == 0)
    def _init():
        acc_ref[...] = jnp.zeros_like(acc_ref)

    acc_ref[...] += jnp.dot(x_ref[...], w_ref[...],          # bf16 x bf16
                            preferred_element_type=jnp.float32)

    @pl.when(pl.program_id(2) == pl.num_programs(2) - 1)
    def _finalize():
        y = acc_ref[...] + b_ref[...]                         # f32 epilogue
        if activation == "relu":
            y = jnp.maximum(y, 0.0)
        o_ref[...] = y.astype(o_ref.dtype)


def pallas_linear(x, w, b, activation=None, tm=512, tn=1024, tk=512):
    # x: (M, K) bf16, w: (K, N) bf16 (pre-transposed from torch (N, K)), b: (N,) f32
    M, K = x.shape
    K2, N = w.shape
    assert K == K2
    tm = _pick_tile(M, tm, 8)
    tn = _pick_tile(N, tn, 128)
    tk = _pick_tile(K, tk, 128)
    grid = (M // tm, N // tn, K // tk)
    cost = pl.CostEstimate(
        flops=2 * M * N * K,
        transcendentals=0,
        bytes_accessed=M * K * 2 + K * N * 2 + M * N * 2 + N * 4)
    return pl.pallas_call(
        functools.partial(_matmul_kernel, activation=activation),
        out_shape=jax.ShapeDtypeStruct((M, N), jnp.bfloat16),
        grid_spec=pltpu.PrefetchScalarGridSpec(
            num_scalar_prefetch=0,
            grid=grid,
            in_specs=[
                pl.BlockSpec((tm, tk), lambda i, j, k: (i, k)),
                pl.BlockSpec((tk, tn), lambda i, j, k: (k, j)),
                pl.BlockSpec((1, tn), lambda i, j, k: (0, j)),
            ],
            out_specs=pl.BlockSpec((tm, tn), lambda i, j, k: (i, j)),
            scratch_shapes=[pltpu.VMEM((tm, tn), jnp.float32)]),
        compiler_params=pltpu.CompilerParams(
            dimension_semantics=("parallel", "parallel", "arbitrary"),
            vmem_limit_bytes=VMEM_LIMIT),
        cost_estimate=cost,
    )(x, w, b.reshape(1, N))


# --------------------- multi-head attention (per batch) --------------------- #

def _mha_kernel(qkv_ref, bias_ref, o_ref, *, num_heads, scale):
    S = qkv_ref.shape[1]
    H = qkv_ref.shape[2] // 3
    Dh = H // num_heads
    qkv = qkv_ref[0]                         # (S, 3H) bf16, lane-dense slab
    bias = bias_ref[0]                       # (1, S) f32 additive key-pad bias

    heads_out = []
    for h in range(num_heads):               # static unroll over heads
        # scale applied to q (S*Dh muls) instead of the (S,S) scores
        q_h = qkv[:, h * Dh:(h + 1) * Dh] * scale
        k_h = qkv[:, H + h * Dh:H + (h + 1) * Dh]
        v_h = qkv[:, 2 * H + h * Dh:2 * H + (h + 1) * Dh]
        s = jax.lax.dot_general(q_h, k_h, (((1,), (1,)), ((), ())),
                                preferred_element_type=jnp.float32)   # (S, S)
        s = s + bias                          # f32 softmax statistics
        m = jnp.max(s, axis=-1, keepdims=True)
        p = jnp.exp(s - m)
        denom = jnp.sum(p, axis=-1, keepdims=True)
        p = p * pl.reciprocal(denom, approx=True)          # EUP, not VALU divide
        heads_out.append(jnp.dot(p.astype(jnp.bfloat16), v_h,
                                 preferred_element_type=jnp.float32))
    out = jnp.concatenate(heads_out, axis=-1)               # (S, H) lane-dense
    o_ref[0] = out.astype(o_ref.dtype)
    # TODO(synk): for very long sequences, block the key axis flash-style
    # (online softmax) instead of materializing per-head (S, S) scores.


def pallas_mha(qkv, key_bias, num_heads, scale):
    # qkv: (B, S, 3H) bf16; key_bias: (B, 1, S) f32 additive (-1e30 at pads)
    B, S, H3 = qkv.shape
    H = H3 // 3
    Dh = H // num_heads
    cost = pl.CostEstimate(
        flops=4 * B * num_heads * S * S * Dh,
        transcendentals=B * num_heads * S * S,
        bytes_accessed=B * S * H3 * 2 + B * S * 4 + B * S * H * 2)
    return pl.pallas_call(
        functools.partial(_mha_kernel, num_heads=num_heads, scale=scale),
        out_shape=jax.ShapeDtypeStruct((B, S, H), jnp.bfloat16),
        grid=(B,),
        in_specs=[pl.BlockSpec((1, S, H3), lambda b: (b, 0, 0)),
                  pl.BlockSpec((1, 1, S), lambda b: (b, 0, 0))],
        out_specs=pl.BlockSpec((1, S, H), lambda b: (b, 0, 0)),
        compiler_params=pltpu.CompilerParams(
            dimension_semantics=("parallel",),
            vmem_limit_bytes=VMEM_LIMIT),
        cost_estimate=cost,
    )(qkv, key_bias)


# ------------------ fused out_proj + residual + LayerNorm ------------------- #

def _proj_add_ln_kernel(a_ref, r_ref, w_ref, b_ref, g_ref, bb_ref, o_ref, *, eps):
    y = jnp.dot(a_ref[...], w_ref[...], preferred_element_type=jnp.float32)
    x = y + b_ref[...] + r_ref[...].astype(jnp.float32)
    mean = jnp.mean(x, axis=-1, keepdims=True)
    var = jnp.mean((x - mean) ** 2, axis=-1, keepdims=True)
    xn = (x - mean) * jax.lax.rsqrt(var + eps)
    o_ref[...] = (xn * g_ref[...] + bb_ref[...]).astype(o_ref.dtype)


def pallas_proj_add_layernorm(attn, resid, w, b, gamma, beta, eps=1e-5, tm=256):
    # out = LayerNorm(resid + attn @ w + b); all activations bf16, stats in f32
    M, H = attn.shape
    tm = _pick_tile(M, tm, 8)
    row_spec = pl.BlockSpec((tm, H), lambda i: (i, 0))
    vec_spec = pl.BlockSpec((1, H), lambda i: (0, 0))
    cost = pl.CostEstimate(
        flops=2 * M * H * H + 10 * M * H,
        transcendentals=M,
        bytes_accessed=2 * M * H * 2 + H * H * 2 + M * H * 2 + 4 * H * 4)
    return pl.pallas_call(
        functools.partial(_proj_add_ln_kernel, eps=eps),
        out_shape=jax.ShapeDtypeStruct((M, H), jnp.bfloat16),
        grid=(M // tm,),
        in_specs=[row_spec, row_spec,
                  pl.BlockSpec((H, H), lambda i: (0, 0)),
                  vec_spec, vec_spec, vec_spec],
        out_specs=row_spec,
        compiler_params=pltpu.CompilerParams(
            dimension_semantics=("parallel",),
            vmem_limit_bytes=VMEM_LIMIT),
        cost_estimate=cost,
    )(attn, resid, w, b.reshape(1, H), gamma.reshape(1, H), beta.reshape(1, H))


# ---- fused FFN (ff1+ReLU+ff2, F-tiled) + residual + LayerNorm --------------- #

def _ffn_add_ln_kernel(x_ref, w1_ref, b1_ref, w2_ref, b2_ref, g_ref, bb_ref,
                       o_ref, acc_ref, *, eps):
    @pl.when(pl.program_id(1) == 0)
    def _init():
        acc_ref[...] = jnp.zeros_like(acc_ref)

    h = jnp.dot(x_ref[...], w1_ref[...],
                preferred_element_type=jnp.float32) + b1_ref[...]     # (tm, tf)
    h = jnp.maximum(h, 0.0)
    acc_ref[...] += jnp.dot(h.astype(jnp.bfloat16), w2_ref[...],
                            preferred_element_type=jnp.float32)       # (tm, H)

    @pl.when(pl.program_id(1) == pl.num_programs(1) - 1)
    def _finalize():
        z = acc_ref[...] + b2_ref[...] + x_ref[...].astype(jnp.float32)
        mean = jnp.mean(z, axis=-1, keepdims=True)
        var = jnp.mean((z - mean) ** 2, axis=-1, keepdims=True)
        zn = (z - mean) * jax.lax.rsqrt(var + eps)
        o_ref[...] = (zn * g_ref[...] + bb_ref[...]).astype(o_ref.dtype)


def pallas_ffn_add_layernorm(x, w1, b1, w2, b2, gamma, beta, eps=1e-5,
                             tm=256, tf=1024):
    # out = LayerNorm(x + relu(x @ w1 + b1) @ w2 + b2)
    # The 4H hidden dimension is streamed in tf-wide blocks (inner "arbitrary"
    # grid axis); the second GEMM accumulates into a (tm, H) f32 VMEM scratch.
    M, H = x.shape
    F = w1.shape[1]
    tm = _pick_tile(M, tm, 8)
    tf = _pick_tile(F, tf, 128)
    grid = (M // tm, F // tf)
    row_spec = pl.BlockSpec((tm, H), lambda i, f: (i, 0))
    vecH_spec = pl.BlockSpec((1, H), lambda i, f: (0, 0))
    cost = pl.CostEstimate(
        flops=4 * M * H * F + 10 * M * H,
        transcendentals=M,
        bytes_accessed=2 * M * H * 2 + 2 * H * F * 2 + F * 4 + 4 * H * 4)
    return pl.pallas_call(
        functools.partial(_ffn_add_ln_kernel, eps=eps),
        out_shape=jax.ShapeDtypeStruct((M, H), jnp.bfloat16),
        grid_spec=pltpu.PrefetchScalarGridSpec(
            num_scalar_prefetch=0,
            grid=grid,
            in_specs=[row_spec,
                      pl.BlockSpec((H, tf), lambda i, f: (0, f)),
                      pl.BlockSpec((1, tf), lambda i, f: (0, f)),
                      pl.BlockSpec((tf, H), lambda i, f: (f, 0)),
                      vecH_spec, vecH_spec, vecH_spec],
            out_specs=row_spec,
            scratch_shapes=[pltpu.VMEM((tm, H), jnp.float32)]),
        compiler_params=pltpu.CompilerParams(
            dimension_semantics=("parallel", "arbitrary"),
            vmem_limit_bytes=VMEM_LIMIT),
        cost_estimate=cost,
    )(x, w1, b1.reshape(1, F), w2, b2.reshape(1, H),
      gamma.reshape(1, H), beta.reshape(1, H))


# ------------------------------ Parameter init ------------------------------ #

def init_params(key, dict_size, seq_length, H, L, A):
    def nrm(k, shape, scale=0.02, dtype=jnp.float32):
        return (scale * jax.random.normal(k, shape, dtype=jnp.float32)).astype(dtype)

    keys = jax.random.split(key, 4 + L)
    # next-sentence head: out-features padded 2 -> 128 for lane-dense stores;
    # the 2 real logits are sliced outside the kernel.
    next_w = jnp.zeros((H, 128), jnp.float32)
    next_w = next_w.at[:, :2].set(0.02 * jax.random.normal(keys[3], (H, 2)))
    params = {
        "emb_token": nrm(keys[0], (dict_size, H)),
        "emb_pos": nrm(keys[1], (seq_length, H)),
        "emb_segment": nrm(keys[2], (2, H)),
        "next_w": next_w.astype(jnp.bfloat16),
        "next_b": jnp.zeros((128,), jnp.float32),
        "num_heads": A,
        "layers": [],
    }
    for l in range(L):
        lk = jax.random.split(keys[4 + l], 4)
        params["layers"].append({
            # Linear weights stored (in_features, out_features) in bf16, MXU-ready.
            # NOTE: transpose from PyTorch's (out, in) layout when loading real ckpts.
            "in_proj_w": nrm(lk[0], (H, 3 * H), dtype=jnp.bfloat16),
            "in_proj_b": jnp.zeros((3 * H,), jnp.float32),
            "out_proj_w": nrm(lk[1], (H, H), dtype=jnp.bfloat16),
            "out_proj_b": jnp.zeros((H,), jnp.float32),
            "ff1_w": nrm(lk[2], (H, 4 * H), dtype=jnp.bfloat16),
            "ff1_b": jnp.zeros((4 * H,), jnp.float32),
            "ff2_w": nrm(lk[3], (4 * H, H), dtype=jnp.bfloat16),
            "ff2_b": jnp.zeros((H,), jnp.float32),
            "ln1_g": jnp.ones((H,), jnp.float32),
            "ln1_b": jnp.zeros((H,), jnp.float32),
            "ln2_g": jnp.ones((H,), jnp.float32),
            "ln2_b": jnp.zeros((H,), jnp.float32),
        })
    return params


# ---------------------------------- Forward --------------------------------- #

def bert_forward(params, token_input, pos_input, seg_input, mask):
    # Embedding lookups (gather) kept in plain JAX glue.
    # TODO(synk): embedding gather has no clean BlockSpec expression; left to XLA.
    x = (params["emb_token"][token_input]
         + params["emb_pos"][pos_input]
         + params["emb_segment"][seg_input])          # (B, S, H) f32

    B, S, H = x.shape
    A = params["num_heads"]
    Dh = H // A
    scale = 1.0 / math.sqrt(Dh)

    # key padding mask: True => ignore.  Large negative additive bias added to
    # the f32 scores inside the kernel (equivalent to PyTorch's -inf mask for
    # non-fully-masked rows).
    key_bias = jnp.where(mask.astype(bool), -1e30, 0.0).astype(jnp.float32)
    key_bias = key_bias.reshape(B, 1, S)

    # Batch-first residual stream in bf16; rows are (b*S + s) so per-batch
    # slabs are contiguous and the MHA kernel needs no XLA-side transposes.
    x_flat = x.astype(jnp.bfloat16).reshape(B * S, H)

    for layer in params["layers"]:
        # --- self attention ---
        qkv = pallas_linear(x_flat, layer["in_proj_w"], layer["in_proj_b"])
        qkv = qkv.reshape(B, S, 3 * H)                 # free reshape, no transpose
        attn = pallas_mha(qkv, key_bias, A, scale)     # (B, S, H) bf16, lane-dense
        attn = attn.reshape(B * S, H)
        # TODO(synk): dropout omitted (eval-mode identity).
        x_flat = pallas_proj_add_layernorm(
            attn, x_flat, layer["out_proj_w"], layer["out_proj_b"],
            layer["ln1_g"], layer["ln1_b"])

        # --- feed forward (fused ff1+relu+ff2+residual+LN, F-tiled) ---
        x_flat = pallas_ffn_add_layernorm(
            x_flat, layer["ff1_w"], layer["ff1_b"],
            layer["ff2_w"], layer["ff2_b"],
            layer["ln2_g"], layer["ln2_b"])

    x_bf = x_flat.reshape(B, S, H)

    # next-sentence head on the first token's representation (B, H)
    y_pad = pallas_linear(x_bf[:, 0, :], params["next_w"], params["next_b"])
    y = y_pad[:, :2].astype(jnp.float32)

    # Match PyTorch output layout (S, B, H); cast back to f32 at the boundary.
    x_out = jnp.transpose(x_bf, (1, 0, 2)).astype(jnp.float32)
    return x_out, y


# ----------------------------------- Main ------------------------------------ #

if __name__ == "__main__":
    DICT_SIZE = 50
    SEQ_LEN = 8
    H_SIZE = 32
    L_SIZE = 2
    A_SIZE = 4
    BATCH = 2

    key = jax.random.PRNGKey(0)
    pk, tk, sk = jax.random.split(key, 3)

    params = init_params(pk, DICT_SIZE, SEQ_LEN, H_SIZE, L_SIZE, A_SIZE)

    token_input = jax.random.randint(tk, (BATCH, SEQ_LEN), 0, DICT_SIZE, dtype=jnp.int32)
    pos_input = jnp.broadcast_to(jnp.arange(SEQ_LEN, dtype=jnp.int32), (BATCH, SEQ_LEN))
    seg_input = jax.random.randint(sk, (BATCH, SEQ_LEN), 0, 2, dtype=jnp.int32)
    # pad-mask: last position of each sequence is padding (True => ignore)
    mask = jnp.zeros((BATCH, SEQ_LEN), jnp.int32).at[:, -1].set(1)

    x_out, y_out = bert_forward(params, token_input, pos_input, seg_input, mask)
    jax.block_until_ready((x_out, y_out))

    assert x_out.shape == (SEQ_LEN, BATCH, H_SIZE)
    assert y_out.shape == (BATCH, 2)
    assert bool(jnp.all(jnp.isfinite(x_out))) and bool(jnp.all(jnp.isfinite(y_out)))
    print("KERNEL_OK")
</pallas_src>

<mosaic_0001>
module attributes {stable_mosaic.version = 11 : i64} {
  func.func @_matmul_kernel(%arg0: i32, %arg1: i32, %arg2: i32, %arg3: memref<16x32xbf16, #tpu.memory_space<vmem>>, %arg4: memref<32x96xbf16, #tpu.memory_space<vmem>>, %arg5: memref<1x96xf32, #tpu.memory_space<vmem>>, %arg6: memref<16x96xbf16, #tpu.memory_space<vmem>>, %arg7: memref<16x96xf32, #tpu.memory_space<vmem>>) attributes {dimension_semantics = [#tpu.dimension_semantics<parallel>, #tpu.dimension_semantics<parallel>, #tpu.dimension_semantics<arbitrary>], iteration_bounds = array<i64: 1, 1, 1>, scalar_prefetch = 0 : i64, scratch_operands = 1 : i64, tpu.core_type = #tpu.core_type<tc>, window_params = [{transform_indices = @transform_0, window_bounds = array<i64: 16, 32>}, {transform_indices = @transform_1, window_bounds = array<i64: 32, 96>}, {transform_indices = @transform_2, window_bounds = array<i64: 1, 96>}, {transform_indices = @transform_3, window_bounds = array<i64: 16, 96>}]} {
    %c0_i32 = arith.constant 0 : i32
    %0 = arith.cmpi eq, %arg2, %c0_i32 : i32
    %1 = arith.extui %0 : i1 to i32
    %c0_i32_0 = arith.constant 0 : i32
    %2 = arith.cmpi ne, %1, %c0_i32_0 : i32
    scf.if %2 {
      %cst_10 = arith.constant 0.000000e+00 : f32
      %12 = vector.broadcast %cst_10 : f32 to vector<16x96xf32>
      %c0_11 = arith.constant 0 : index
      %c0_12 = arith.constant 0 : index
      %13 = vector.load %arg7[%c0_11, %c0_12] : memref<16x96xf32, #tpu.memory_space<vmem>>, vector<16x96xf32>
      tpu.vector_store %arg7[%c0_11, %c0_12], %12 {strides = array<i32>} : memref<16x96xf32, #tpu.memory_space<vmem>>, vector<16x96xf32>,
    } else {
    }
    %c0 = arith.constant 0 : index
    %c0_1 = arith.constant 0 : index
    %3 = vector.load %arg7[%c0, %c0_1] : memref<16x96xf32, #tpu.memory_space<vmem>>, vector<16x96xf32>
    %c0_2 = arith.constant 0 : index
    %c0_3 = arith.constant 0 : index
    %4 = vector.load %arg3[%c0_2, %c0_3] : memref<16x32xbf16, #tpu.memory_space<vmem>>, vector<16x32xbf16>
    %c0_4 = arith.constant 0 : index
    %c0_5 = arith.constant 0 : index
    %5 = vector.load %arg4[%c0_4, %c0_5] : memref<32x96xbf16, #tpu.memory_space<vmem>>, vector<32x96xbf16>
    %cst = arith.constant dense<0.000000e+00> : vector<16x96xf32>
    %6 = tpu.matmul %4, %5, %cst {dimension_numbers = #tpu.dot_dimension_numbers<[1], [0], [0], [1], [0, 0, 1, 1], [], []>} : vector<16x32xbf16>, vector<32x96xbf16>, vector<16x96xf32> -> vector<16x96xf32>
    %7 = arith.addf %3, %6 : vector<16x96xf32>
    %c0_6 = arith.constant 0 : index
    %c0_7 = arith.constant 0 : index
    %8 = vector.load %arg7[%c0_6, %c0_7] : memref<16x96xf32, #tpu.memory_space<vmem>>, vector<16x96xf32>
    tpu.vector_store %arg7[%c0_6, %c0_7], %7 {strides = array<i32>} : memref<16x96xf32, #tpu.memory_space<vmem>>, vector<16x96xf32>,
    %c0_i32_8 = arith.constant 0 : i32
    %9 = arith.cmpi eq, %arg2, %c0_i32_8 : i32
    %10 = arith.extui %9 : i1 to i32
    %c0_i32_9 = arith.constant 0 : i32
    %11 = arith.cmpi ne, %10, %c0_i32_9 : i32
    scf.if %11 {
      %c0_10 = arith.constant 0 : index
      %c0_11 = arith.constant 0 : index
      %12 = vector.load %arg7[%c0_10, %c0_11] : memref<16x96xf32, #tpu.memory_space<vmem>>, vector<16x96xf32>
      %c0_12 = arith.constant 0 : index
      %c0_13 = arith.constant 0 : index
      %13 = vector.load %arg5[%c0_12, %c0_13] : memref<1x96xf32, #tpu.memory_space<vmem>>, vector<1x96xf32>
      %14 = vector.broadcast %13 : vector<1x96xf32> to vector<16x96xf32>
      %15 = arith.addf %12, %14 : vector<16x96xf32>
      %16 = arith.truncf %15 : vector<16x96xf32> to vector<16x96xbf16>
      %c0_14 = arith.constant 0 : index
      %c0_15 = arith.constant 0 : index
      %17 = vector.load %arg6[%c0_14, %c0_15] : memref<16x96xbf16, #tpu.memory_space<vmem>>, vector<16x96xbf16>
      tpu.vector_store %arg6[%c0_14, %c0_15], %16 {strides = array<i32>} : memref<16x96xbf16, #tpu.memory_space<vmem>>, vector<16x96xbf16>,
    } else {
    }
    return
  }
  func.func @transform_0(%arg0: i32, %arg1: i32, %arg2: i32) -> (i32, i32) {
    %c0_i32 = arith.constant 0 : i32
    return %arg0, %arg2 : i32, i32
  }
  func.func @transform_1(%arg0: i32, %arg1: i32, %arg2: i32) -> (i32, i32) {
    %c0_i32 = arith.constant 0 : i32
    return %arg2, %arg1 : i32, i32
  }
  func.func @transform_2(%arg0: i32, %arg1: i32, %arg2: i32) -> (i32, i32) {
    %c0_i32 = arith.constant 0 : i32
    %c0_i32_0 = arith.constant 0 : i32
    return %c0_i32, %arg1 : i32, i32
  }
  func.func @transform_3(%arg0: i32, %arg1: i32, %arg2: i32) -> (i32, i32) {
    %c0_i32 = arith.constant 0 : i32
    return %arg0, %arg1 : i32, i32
  }
}

</mosaic_0001>

<llo_original>
// kernel: tpu_custom_call.1
$region0: #{tpu_custom_call.1}
  #allocation0 [shape = 'u32[]', space=smem, size = 0x4, offset = 0x4, fixed_abs, tag = 'smem constant byte address 0x4 - core index']
  #allocation1 [shape = 'u32[144,128]{1,0:T(1,128)}', space=vmem, size = 0x12000, scoped, tag = 'internal scratch']
  #allocation2 [shape = 'f32[16,96]{1,0:T(8,128)}', space=vmem, size = 0x2000, scoped, tag = 'scratch operand']
  %s0 = inlined_call_operand.hbm [shape: bf16[16,32], index: 0, kind: input, shape index: {}]
  %s1 = inlined_call_operand.hbm [shape: bf16[32,96], index: 1, kind: input, shape index: {}]
  %s2 = inlined_call_operand.vmem [shape: f32[1,96], index: 2, kind: input, shape index: {}]
  %s3 = inlined_call_operand.hbm [shape: bf16[16,96], index: 3, kind: output, shape index: {}]
  %s4 = sld [smem:[#allocation0]]
  $region38: #{tpu_custom_call.1} parent=0
    _
  %s6 = ssub.s32 1, %s4
  %s7 = scalar_select 0, %s6, %s4
  $region1: #{tpu_custom_call.1} parent=0
    #allocation3 [shape = 'u8[4096]{0}', space=vmem, size = 0x1000, scoped, tag = 'input window, operand 0, single buffered']
    #allocation4 [shape = 's32[1]{0}', space=sflag, size = 0x4, scoped, tag = 'scoped memory for tpu_custom_call.1']
    #allocation5 [shape = 's32[1]{0}', space=sflag, size = 0x4, scoped, tag = 'scoped memory for tpu_custom_call.1']
    #allocation6 [shape = 'u8[8192]{0}', space=vmem, size = 0x2000, scoped, tag = 'input window, operand 1, single buffered']
    #allocation7 [shape = 's32[1]{0}', space=sflag, size = 0x4, scoped, tag = 'scoped memory for tpu_custom_call.1']
    #allocation8 [shape = 'u8[4096]{0}', space=vmem, size = 0x1000, scoped, tag = 'output window, operand 0, single buffered']
    %8 = vsyncpa [#allocation4], 0
    %9 = vsyncpa [#allocation7], 0
    %10 = vsyncpa [#allocation5], 0
    // Predicated region
    $region2: #{tpu_custom_call.1} parent=1 // pred_check
      _
    $region3: #{tpu_custom_call.1} parent=1 // pred_check_branch
      %12 = sbr.rel (0) target = $region5
    $region4: #{tpu_custom_call.1} parent=1 // pred_region
      %s14 = ssub.s32 128, 128
      %15 = vsyncadd [#allocation4], %s14
      %s16 = sshll.u32 [#allocation3], 4
      %s17 = int_to_ptr.vmem [resolvable:$true] %s16
      %22 = dma.hbm_to_vmem [thread:$0]  %s0, 128, %s17, [#allocation4], 64, 64, 4
    $region5: #{tpu_custom_call.1} parent=1 // pred_fallthru
      _
    // Predicated region
    $region6: #{tpu_custom_call.1} parent=1 // pred_check
      _
    $region7: #{tpu_custom_call.1} parent=1 // pred_check_branch
      %24 = sbr.rel (0) target = $region9
    $region8: #{tpu_custom_call.1} parent=1 // pred_region
      %s26 = ssub.s32 256, 256
      %27 = vsyncadd [#allocation7], %s26
      %s28 = sshll.u32 [#allocation6], 4
      %s29 = int_to_ptr.vmem [resolvable:$true] %s28
      %34 = dma.hbm_to_vmem [thread:$0]  %s1, 256, %s29, [#allocation7], 64, 64, 4
    $region9: #{tpu_custom_call.1} parent=1 // pred_fallthru
      _
    // Predicated region
    $region10: #{tpu_custom_call.1} parent=1 // pred_check
      _
    $region11: #{tpu_custom_call.1} parent=1 // pred_check_branch
      %36 = sbr.rel (0) target = $region13
    $region12: #{tpu_custom_call.1} parent=1 // pred_region
      _
    $region13: #{tpu_custom_call.1} parent=1 // pred_fallthru
      _
    // Predicated region
    $region14: #{tpu_custom_call.1} parent=1 // pred_check
      _
    $region15: #{tpu_custom_call.1} parent=1 // pred_check_branch
      %38 = sbr.rel (0) target = $region17
    $region16: #{tpu_custom_call.1} parent=1 // pred_region
      %39 = dma.done [#allocation4], 128
    $region17: #{tpu_custom_call.1} parent=1 // pred_fallthru
      _
    // Predicated region
    $region18: #{tpu_custom_call.1} parent=1 // pred_check
      _
    $region19: #{tpu_custom_call.1} parent=1 // pred_check_branch
      %41 = sbr.rel (0) target = $region21
    $region20: #{tpu_custom_call.1} parent=1 // pred_region
      %42 = dma.done [#allocation7], 256
    $region21: #{tpu_custom_call.1} parent=1 // pred_fallthru
      _
    %p44 = scmp.eq.s32.totalorder 0, 0
    // Predicated region
    $region22: #{tpu_custom_call.1} parent=1 // pred_check
      %p45 = pneg %p44
    $region23: #{tpu_custom_call.1} parent=1 // pred_check_branch
      %47 = sbr.rel (%p45) target = $region25
    $region24: #{tpu_custom_call.1} parent=1 // pred_region
      %vm48 = vcmask 785408
      %49 = vst.msk [vmem:[#allocation2] sm:$0xff] %vm48, 0.0
      %50 = vst.msk [vmem:[#allocation2 + $0x8] sm:$0xff] %vm48, 0.0
    $region25: #{tpu_custom_call.1} parent=1 // pred_fallthru
      _
    %v51 = vld [vmem:[#allocation2] sm:$0xff]
    %v52 = vld [vmem:[#allocation2 + $0x8] sm:$0xff]
    %v53 = vld [vmem:[#allocation3] sm:$0xf]
    %v54 = vld [vmem:[#allocation3 + $0x4] sm:$0xf]
    %v55 = vld [vmem:[#allocation6] sm:$0xf]
    %v56 = vld [vmem:[#allocation6 + $0x4] sm:$0xf]
    %v57 = vld [vmem:[#allocation6 + $0x8] sm:$0xf]
    %v58 = vld [vmem:[#allocation6 + $0xc] sm:$0xf]
    %v61 = vunpack.c.l.b16 %v53
    %v62 = vunpack.c.l.b16 %v54
    %v63 = vpack.c.b16 %v62, %v61
    %v68 = vunpack.c.l.b16 %v55
    %v69 = vunpack.c.l.b16 %v56
    %v70 = vunpack.c.l.b16 %v57
    %v71 = vunpack.c.l.b16 %v58
    %v72 = vpack.c.b16 %v69, %v68
    %v73 = vpack.c.b16 %v71, %v70
    %vm76 = vcmask 261120
    %v78 = vsel %vm76, %v63, 0
    %80 = vmatprep.subr.bf16.mxu0 0
    %81 = vmatpush1.bf16.msra.mxu0 0
    %82 = vmatprep.subr.bf16.mxu0 0
    %83 = vmatpush1.bf16.msra.mxu0 0
    %84 = vmatprep.subr.bf16.mxu0 0
    %85 = vmatpush1.bf16.msra.mxu0 0
    %86 = vmatprep.subr.bf16.mxu0 0
    %87 = vmatpush1.bf16.msra.mxu0 0
    %88 = vmatprep.subr.bf16.mxu0 0
    %89 = vmatpush1.bf16.msra.mxu0 0
    %90 = vmatprep.subr.bf16.mxu0 0
    %91 = vmatpush1.bf16.msra.mxu0 0
    %92 = vmatprep.subr.bf16.mxu0 0
    %93 = vmatpush1.bf16.msra.mxu0 %v73
    %94 = vmatprep.subr.bf16.mxu0 0
    %95 = vmatpush1.bf16.msra.mxu0 %v72
    %96 = vmatprep.subr.bf16.mxu0 0
    %97 = vmatpush2.bf16.msra.mxu0 0
    %98 = vmatprep.subr.bf16.mxu0 0
    %99 = vmatpush2.bf16.msra.mxu0 0
    %100 = vmatprep.subr.bf16.mxu0 0
    %101 = vmatpush2.bf16.msra.mxu0 0
    %102 = vmatprep.subr.bf16.mxu0 0
    %103 = vmatpush2.bf16.msra.mxu0 0
    %104 = vmatprep.subr.bf16.mxu0 0
    %105 = vmatpush2.bf16.msra.mxu0 0
    %106 = vmatprep.subr.bf16.mxu0 0
    %107 = vmatpush2.bf16.msra.mxu0 0
    %108 = vmatprep.subr.bf16.mxu0 0
    %109 = vmatpush2.bf16.msra.mxu0 0
    %110 = vmatprep.subr.bf16.mxu0 0
    %111 = vmatpush2.bf16.msra.mxu0 0
    %112 = vmatprep.mubr.bf16.mxu0 0
    %113 = vmatmul.mubr.bf16.gmra.mxu0 %v78
    %v114 = vpop.f32.mrf.mxu0
    %v115 = vadd.f32 0.0, %v114
    %v116 = vpop.f32.mrf.mxu0
    %v117 = vpop.f32.mrf.mxu0
    %v118 = vadd.f32 0.0, %v117
    %v119 = vpop.f32.mrf.mxu0
    %120 = vdwg.mxu0
    %v121 = vadd.f32 %v51, %v115
    %v122 = vadd.f32 %v52, %v118
    %vm123 = vcmask 785408
    %124 = vst.msk [vmem:[#allocation2] sm:$0xff] %vm123, %v121
    %125 = vst.msk [vmem:[#allocation2 + $0x8] sm:$0xff] %vm123, %v122
    // Predicated region
    $region26: #{tpu_custom_call.1} parent=1 // pred_check
      %p126 = pneg %p44
    $region27: #{tpu_custom_call.1} parent=1 // pred_check_branch
      %128 = sbr.rel (%p126) target = $region29
    $region28: #{tpu_custom_call.1} parent=1 // pred_region
      %v129 = vld [vmem:[#allocation2] sm:$0xff]
      %v130 = vld [vmem:[#allocation2 + $0x8] sm:$0xff]
      %v131 = vld [vmem:[%s2] sm:$0x1]
      %v133 = vlaneseq
      %v134 = vshrl.u32 %v133, 7
      %v135 = vsub.s32 0, %v134
      %v136 = vrot.slane %v131, %v135
      %v138 = vadd.f32 %v129, %v136
      %v139 = vadd.f32 %v130, %v136
      %v140 = vpack.c.bf16 %v139, %v138
      %v142 = vunpack.c.l.b16 %v140
      %v143 = vunpack.c.h.b16 %v140
      %v144 = vpack.c.b16 %v142, %v142
      %v145 = vpack.c.b16 %v143, %v143
      %vm148 = vcmask 781312
      %149 = vst.msk [vmem:[#allocation8] sm:$0xf] %vm148, %v144
      %150 = vst.msk [vmem:[#allocation8 + $0x4] sm:$0xf] %vm148, %v145
    $region29: #{tpu_custom_call.1} parent=1 // pred_fallthru
      _
    // Predicated region
    $region30: #{tpu_custom_call.1} parent=1 // pred_check
      _
    $region31: #{tpu_custom_call.1} parent=1 // pred_check_branch
      %152 = sbr.rel (0) target = $region33
    $region32: #{tpu_custom_call.1} parent=1 // pred_region
      %s154 = ssub.s32 128, 128
      %155 = vsyncadd [#allocation5], %s154
      %s156 = sshll.u32 [#allocation8], 4
      %s157 = int_to_ptr.vmem [resolvable:$true] %s156
      %162 = dma.vmem_to_hbm [thread:$0]  %s157, 128, %s3, [#allocation5], 64, 64, 4
    $region33: #{tpu_custom_call.1} parent=1 // pred_fallthru
      _
    // Predicated region
    $region34: #{tpu_custom_call.1} parent=1 // pred_check
      _
    $region35: #{tpu_custom_call.1} parent=1 // pred_check_branch
      %164 = sbr.rel (0) target = $region37
    $region36: #{tpu_custom_call.1} parent=1 // pred_region
      %165 = dma.done [#allocation5], 128
    $region37: #{tpu_custom_call.1} parent=1 // pred_fallthru
      _
    %166 = vsyncpa [#allocation4], 1
    %167 = vsyncpa [#allocation7], 1
    %168 = vsyncpa [#allocation5], 1

</llo_original>
